<compile_context>
chip_gen: v5e
topology: v5e:2x2
jax: 0.10.0
libtpu: 0.0.40
codegen_flags: <defaults>
</compile_context>

<pallas_src>
import jax
import jax.numpy as jnp
from jax.experimental import pallas as pl
from jax.experimental.pallas import tpu as pltpu


def _flow_kernel(x_ref, w1_ref, b1_ref, w2_ref, b2_ref, z_ref, ld_ref):
    C = x_ref.shape[0]
    TB = x_ref.shape[2]

    x = x_ref[...]  # (C, C, TB): x[i, r, b] = x_orig[b, r, i]

    # ---- fc1 + ReLU: C-term scalar*vector FMA chain, lane-dense (C, TB) slabs.
    # TODO(synk): for larger C (>= ~32) switch this (and fc2) to an MXU dot on
    # the (C, C*TB) reshape instead of the VPU scalar-FMA chain.
    z_slabs = []
    for o in range(C):
        acc = x[0] * w1_ref[o, 0] + b1_ref[o]
        for i in range(1, C):
            acc = acc + x[i] * w1_ref[o, i]
        slab = jnp.maximum(acc, 0.0)               # (C, TB): z[b, r, o]
        z_slabs.append(slab)
        z_ref[o, :, :] = slab.astype(z_ref.dtype)  # lane-dense store

    # ---- fc2: y[b, r, c] for each output channel c, same FMA-chain structure.
    y_slabs = []
    for c in range(C):
        acc = z_slabs[0] * w2_ref[c, 0] + b2_ref[c]
        for o in range(1, C):
            acc = acc + z_slabs[o] * w2_ref[c, o]
        y_slabs.append(acc)                        # (C, TB): y[b, r, c]

    # a[c, r, b] = y[b, r, c] = M_b[r, c], i.e. a[:, :, b] = M_b^T.
    # det(M^T) = det(M) and we only need log|det|, so no pivot-sign tracking.
    a = jnp.stack(y_slabs, axis=0)                 # (C, C, TB)

    # ---- Gaussian elimination, vectorized over the TB lane axis, shrinking
    # active submatrix (static slices only; no full-tile where-masks).
    # TODO(synk): torch.det uses LU with partial pivoting; this unpivoted
    # elimination (with a tiny-pivot clamp) is less robust for matrices that
    # genuinely need row swaps, though exact singular matrices still give -inf.
    ld = jnp.zeros((1, TB), jnp.float32)
    for k in range(C):
        m = C - k
        pivot = a[0:1, 0:1, :]                     # (1, 1, TB)
        absp = jnp.abs(pivot)
        ld = ld + jnp.log(absp).reshape(1, TB)     # exact |pivot| in the log
        if m > 1:
            safe = jnp.maximum(absp, jnp.float32(1e-30))
            inv = pl.reciprocal(jnp.where(pivot < 0.0, -safe, safe), approx=True)
            col = a[1:, 0:1, :]                    # (m-1, 1, TB)
            row = a[0:1, 1:, :]                    # (1, m-1, TB)
            a = a[1:, 1:, :] - (col * inv) * row   # Schur complement (m-1, m-1, TB)
    ld_ref[...] = ld                               # lane-dense (1, TB) row


def _pick_tb(B: int, C: int) -> int:
    """Batch (lane) tile: biggest lane-dense tile within a conservative VMEM
    budget that fits every generation (incl. v7x's 64 MiB physical VMEM)."""
    # Per-block f32 VMEM ~= double-buffered x + double-buffered z + ~2 block
    # sized temporaries (y / elimination state) = 6 * C*C*TB * 4 bytes.
    budget = 24 << 20
    cap = budget // (24 * C * C)
    cap = max(128, (cap // 128) * 128)
    if B <= 512:
        return B          # single block: block dim == array dim is always legal
    # Aim for >= 4 grid steps so v7x's two TensorCores and the DMA pipeline are
    # actually used; keep TB a multiple of 128 (lane-dense, legal block shape).
    tb = -(-B // 4)
    tb = -(-tb // 128) * 128
    return int(min(tb, cap))


def flow_layer(x, w1, b1, w2, b2):
    """x: (B, C, C) float32. w1/w2: (C, C) torch-style (out, in). b1/b2: (C,)."""
    B, C, C2 = x.shape
    assert C == C2, "torch.det needs square trailing dims, so x must be (B, C, C)"

    TB = _pick_tb(B, C)
    nb = pl.cdiv(B, TB)

    # Lane-dense layout plumbing: batch on the last axis. xT[i, r, b] = x[b, r, i].
    xT = jnp.transpose(x, (2, 1, 0))

    zT, ld = pl.pallas_call(
        _flow_kernel,
        out_shape=(
            jax.ShapeDtypeStruct((C, C, B), x.dtype),      # zT[o, r, b] = z[b, r, o]
            jax.ShapeDtypeStruct((1, B), jnp.float32),      # per-matrix log|det|
        ),
        grid_spec=pltpu.PrefetchScalarGridSpec(
            num_scalar_prefetch=0,
            grid=(nb,),
            in_specs=[
                pl.BlockSpec((C, C, TB), lambda i: (0, 0, i)),          # x slab
                pl.BlockSpec(memory_space=pltpu.MemorySpace.SMEM),      # w1
                pl.BlockSpec(memory_space=pltpu.MemorySpace.SMEM),      # b1
                pl.BlockSpec(memory_space=pltpu.MemorySpace.SMEM),      # w2
                pl.BlockSpec(memory_space=pltpu.MemorySpace.SMEM),      # b2
            ],
            out_specs=[
                pl.BlockSpec((C, C, TB), lambda i: (0, 0, i)),          # zT
                pl.BlockSpec((1, TB), lambda i: (0, i)),                # ld row
            ],
        ),
        compiler_params=pltpu.CompilerParams(
            # Each batch block is fully independent (no resident accumulator),
            # so the grid axis can shard across v7x's two TensorCores.
            dimension_semantics=("parallel",),
            # Raise v5e's 16 MiB / v6e-v7x's 32 MiB default scoped limit while
            # staying well under v7x's 64 MiB physical VMEM.
            vmem_limit_bytes=48 * 1024 * 1024,
        ),
    )(xT, w1, b1, w2, b2)

    z = jnp.transpose(zT, (2, 1, 0))
    ldj = jnp.sum(ld)
    return z, ldj


def _ref_forward(x, w1, b1, w2, b2):
    z = jax.nn.relu(x @ w1.T + b1)
    y = z @ w2.T + b2
    _, logabsdet = jnp.linalg.slogdet(y)
    return z, jnp.sum(logabsdet)


if __name__ == "__main__":
    B, C = 2, 4  # batch, in_channels
    key = jax.random.PRNGKey(0)
    kx, k1, k2, k3, k4 = jax.random.split(key, 5)

    # Deterministic, PyTorch-Linear-style init: U(-1/sqrt(C), 1/sqrt(C)).
    bound = 1.0 / jnp.sqrt(jnp.float32(C))
    x = jax.random.normal(kx, (B, C, C), dtype=jnp.float32)
    w1 = jax.random.uniform(k1, (C, C), jnp.float32, -bound, bound)
    b1 = jax.random.uniform(k2, (C,), jnp.float32, -bound, bound)
    w2 = jax.random.uniform(k3, (C, C), jnp.float32, -bound, bound)
    b2 = jax.random.uniform(k4, (C,), jnp.float32, -bound, bound)

    z, ldj = flow_layer(x, w1, b1, w2, b2)
    jax.block_until_ready((z, ldj))

    z_ref, ldj_ref = _ref_forward(x, w1, b1, w2, b2)
    assert jnp.allclose(z, z_ref, rtol=1e-5, atol=1e-5), "z mismatch"
    assert jnp.allclose(ldj, ldj_ref, rtol=2e-2, atol=2e-2), "log-det mismatch"

    print("KERNEL_OK")
</pallas_src>

<mosaic_0001>
module attributes {stable_mosaic.version = 11 : i64} {
  func.func @_flow_kernel(%arg0: i32, %arg1: memref<4x4x2xf32, #tpu.memory_space<vmem>>, %arg2: memref<4x4xf32, #tpu.memory_space<smem>>, %arg3: memref<4xf32, #tpu.memory_space<smem>>, %arg4: memref<4x4xf32, #tpu.memory_space<smem>>, %arg5: memref<4xf32, #tpu.memory_space<smem>>, %arg6: memref<4x4x2xf32, #tpu.memory_space<vmem>>, %arg7: memref<1x2xf32, #tpu.memory_space<vmem>>) attributes {dimension_semantics = [#tpu.dimension_semantics<parallel>], iteration_bounds = array<i64: 1>, scalar_prefetch = 0 : i64, scratch_operands = 0 : i64, tpu.core_type = #tpu.core_type<tc>, window_params = [{transform_indices = @transform_0, window_bounds = array<i64: 4, 4, 2>}, {transform_indices = @transform_1, window_bounds = array<i64: 4, 4>}, {transform_indices = @transform_2, window_bounds = array<i64: 4>}, {transform_indices = @transform_3, window_bounds = array<i64: 4, 4>}, {transform_indices = @transform_4, window_bounds = array<i64: 4>}, {transform_indices = @transform_5, window_bounds = array<i64: 4, 4, 2>}, {transform_indices = @transform_6, window_bounds = array<i64: 1, 2>}]} {
    %c0 = arith.constant 0 : index
    %c0_0 = arith.constant 0 : index
    %c0_1 = arith.constant 0 : index
    %0 = vector.load %arg1[%c0, %c0_0, %c0_1] : memref<4x4x2xf32, #tpu.memory_space<vmem>>, vector<4x4x2xf32>
    %1 = vector.extract_strided_slice %0 {offsets = [0, 0, 0], sizes = [1, 4, 2], strides = [1, 1, 1]} : vector<4x4x2xf32> to vector<1x4x2xf32>
    %2 = vector.shape_cast %1 : vector<1x4x2xf32> to vector<4x2xf32>
    %c0_2 = arith.constant 0 : index
    %c0_3 = arith.constant 0 : index
    %3 = memref.load %arg2[%c0_2, %c0_3] : memref<4x4xf32, #tpu.memory_space<smem>>
    %4 = vector.broadcast %3 : f32 to vector<4x2xf32>
    %5 = arith.mulf %2, %4 : vector<4x2xf32>
    %c0_4 = arith.constant 0 : index
    %6 = memref.load %arg3[%c0_4] : memref<4xf32, #tpu.memory_space<smem>>
    %7 = vector.broadcast %6 : f32 to vector<4x2xf32>
    %8 = arith.addf %5, %7 : vector<4x2xf32>
    %9 = vector.extract_strided_slice %0 {offsets = [1, 0, 0], sizes = [1, 4, 2], strides = [1, 1, 1]} : vector<4x4x2xf32> to vector<1x4x2xf32>
    %10 = vector.shape_cast %9 : vector<1x4x2xf32> to vector<4x2xf32>
    %c0_5 = arith.constant 0 : index
    %c1 = arith.constant 1 : index
    %11 = memref.load %arg2[%c0_5, %c1] : memref<4x4xf32, #tpu.memory_space<smem>>
    %12 = vector.broadcast %11 : f32 to vector<4x2xf32>
    %13 = arith.mulf %10, %12 : vector<4x2xf32>
    %14 = arith.addf %8, %13 : vector<4x2xf32>
    %15 = vector.extract_strided_slice %0 {offsets = [2, 0, 0], sizes = [1, 4, 2], strides = [1, 1, 1]} : vector<4x4x2xf32> to vector<1x4x2xf32>
    %16 = vector.shape_cast %15 : vector<1x4x2xf32> to vector<4x2xf32>
    %c0_6 = arith.constant 0 : index
    %c2 = arith.constant 2 : index
    %17 = memref.load %arg2[%c0_6, %c2] : memref<4x4xf32, #tpu.memory_space<smem>>
    %18 = vector.broadcast %17 : f32 to vector<4x2xf32>
    %19 = arith.mulf %16, %18 : vector<4x2xf32>
    %20 = arith.addf %14, %19 : vector<4x2xf32>
    %21 = vector.extract_strided_slice %0 {offsets = [3, 0, 0], sizes = [1, 4, 2], strides = [1, 1, 1]} : vector<4x4x2xf32> to vector<1x4x2xf32>
    %22 = vector.shape_cast %21 : vector<1x4x2xf32> to vector<4x2xf32>
    %c0_7 = arith.constant 0 : index
    %c3 = arith.constant 3 : index
    %23 = memref.load %arg2[%c0_7, %c3] : memref<4x4xf32, #tpu.memory_space<smem>>
    %24 = vector.broadcast %23 : f32 to vector<4x2xf32>
    %25 = arith.mulf %22, %24 : vector<4x2xf32>
    %26 = arith.addf %20, %25 : vector<4x2xf32>
    %cst = arith.constant 0.000000e+00 : f32
    %27 = vector.broadcast %cst : f32 to vector<4x2xf32>
    %28 = arith.maximumf %26, %27 : vector<4x2xf32>
    %c0_8 = arith.constant 0 : index
    %c0_9 = arith.constant 0 : index
    %c0_10 = arith.constant 0 : index
    %29 = vector.load %arg6[%c0_8, %c0_9, %c0_10] : memref<4x4x2xf32, #tpu.memory_space<vmem>>, vector<1x4x2xf32>
    %30 = vector.shape_cast %29 : vector<1x4x2xf32> to vector<4x2xf32>
    %31 = vector.shape_cast %28 : vector<4x2xf32> to vector<1x4x2xf32>
    tpu.vector_store %arg6[%c0_8, %c0_9, %c0_10], %31 {strides = array<i32>} : memref<4x4x2xf32, #tpu.memory_space<vmem>>, vector<1x4x2xf32>,
    %32 = vector.extract_strided_slice %0 {offsets = [0, 0, 0], sizes = [1, 4, 2], strides = [1, 1, 1]} : vector<4x4x2xf32> to vector<1x4x2xf32>
    %33 = vector.shape_cast %32 : vector<1x4x2xf32> to vector<4x2xf32>
    %c1_11 = arith.constant 1 : index
    %c0_12 = arith.constant 0 : index
    %34 = memref.load %arg2[%c1_11, %c0_12] : memref<4x4xf32, #tpu.memory_space<smem>>
    %35 = vector.broadcast %34 : f32 to vector<4x2xf32>
    %36 = arith.mulf %33, %35 : vector<4x2xf32>
    %c1_13 = arith.constant 1 : index
    %37 = memref.load %arg3[%c1_13] : memref<4xf32, #tpu.memory_space<smem>>
    %38 = vector.broadcast %37 : f32 to vector<4x2xf32>
    %39 = arith.addf %36, %38 : vector<4x2xf32>
    %40 = vector.extract_strided_slice %0 {offsets = [1, 0, 0], sizes = [1, 4, 2], strides = [1, 1, 1]} : vector<4x4x2xf32> to vector<1x4x2xf32>
    %41 = vector.shape_cast %40 : vector<1x4x2xf32> to vector<4x2xf32>
    %c1_14 = arith.constant 1 : index
    %c1_15 = arith.constant 1 : index
    %42 = memref.load %arg2[%c1_14, %c1_15] : memref<4x4xf32, #tpu.memory_space<smem>>
    %43 = vector.broadcast %42 : f32 to vector<4x2xf32>
    %44 = arith.mulf %41, %43 : vector<4x2xf32>
    %45 = arith.addf %39, %44 : vector<4x2xf32>
    %46 = vector.extract_strided_slice %0 {offsets = [2, 0, 0], sizes = [1, 4, 2], strides = [1, 1, 1]} : vector<4x4x2xf32> to vector<1x4x2xf32>
    %47 = vector.shape_cast %46 : vector<1x4x2xf32> to vector<4x2xf32>
    %c1_16 = arith.constant 1 : index
    %c2_17 = arith.constant 2 : index
    %48 = memref.load %arg2[%c1_16, %c2_17] : memref<4x4xf32, #tpu.memory_space<smem>>
    %49 = vector.broadcast %48 : f32 to vector<4x2xf32>
    %50 = arith.mulf %47, %49 : vector<4x2xf32>
    %51 = arith.addf %45, %50 : vector<4x2xf32>
    %52 = vector.extract_strided_slice %0 {offsets = [3, 0, 0], sizes = [1, 4, 2], strides = [1, 1, 1]} : vector<4x4x2xf32> to vector<1x4x2xf32>
    %53 = vector.shape_cast %52 : vector<1x4x2xf32> to vector<4x2xf32>
    %c1_18 = arith.constant 1 : index
    %c3_19 = arith.constant 3 : index
    %54 = memref.load %arg2[%c1_18, %c3_19] : memref<4x4xf32, #tpu.memory_space<smem>>
    %55 = vector.broadcast %54 : f32 to vector<4x2xf32>
    %56 = arith.mulf %53, %55 : vector<4x2xf32>
    %57 = arith.addf %51, %56 : vector<4x2xf32>
    %cst_20 = arith.constant 0.000000e+00 : f32
    %58 = vector.broadcast %cst_20 : f32 to vector<4x2xf32>
    %59 = arith.maximumf %57, %58 : vector<4x2xf32>
    %c1_21 = arith.constant 1 : index
    %c0_22 = arith.constant 0 : index
    %c0_23 = arith.constant 0 : index
    %60 = vector.load %arg6[%c1_21, %c0_22, %c0_23] : memref<4x4x2xf32, #tpu.memory_space<vmem>>, vector<1x4x2xf32>
    %61 = vector.shape_cast %60 : vector<1x4x2xf32> to vector<4x2xf32>
    %62 = vector.shape_cast %59 : vector<4x2xf32> to vector<1x4x2xf32>
    tpu.vector_store %arg6[%c1_21, %c0_22, %c0_23], %62 {strides = array<i32>} : memref<4x4x2xf32, #tpu.memory_space<vmem>>, vector<1x4x2xf32>,
    %63 = vector.extract_strided_slice %0 {offsets = [0, 0, 0], sizes = [1, 4, 2], strides = [1, 1, 1]} : vector<4x4x2xf32> to vector<1x4x2xf32>
    %64 = vector.shape_cast %63 : vector<1x4x2xf32> to vector<4x2xf32>
    %c2_24 = arith.constant 2 : index
    %c0_25 = arith.constant 0 : index
    %65 = memref.load %arg2[%c2_24, %c0_25] : memref<4x4xf32, #tpu.memory_space<smem>>
    %66 = vector.broadcast %65 : f32 to vector<4x2xf32>
    %67 = arith.mulf %64, %66 : vector<4x2xf32>
    %c2_26 = arith.constant 2 : index
    %68 = memref.load %arg3[%c2_26] : memref<4xf32, #tpu.memory_space<smem>>
    %69 = vector.broadcast %68 : f32 to vector<4x2xf32>
    %70 = arith.addf %67, %69 : vector<4x2xf32>
    %71 = vector.extract_strided_slice %0 {offsets = [1, 0, 0], sizes = [1, 4, 2], strides = [1, 1, 1]} : vector<4x4x2xf32> to vector<1x4x2xf32>
    %72 = vector.shape_cast %71 : vector<1x4x2xf32> to vector<4x2xf32>
    %c2_27 = arith.constant 2 : index
    %c1_28 = arith.constant 1 : index
    %73 = memref.load %arg2[%c2_27, %c1_28] : memref<4x4xf32, #tpu.memory_space<smem>>
    %74 = vector.broadcast %73 : f32 to vector<4x2xf32>
    %75 = arith.mulf %72, %74 : vector<4x2xf32>
    %76 = arith.addf %70, %75 : vector<4x2xf32>
    %77 = vector.extract_strided_slice %0 {offsets = [2, 0, 0], sizes = [1, 4, 2], strides = [1, 1, 1]} : vector<4x4x2xf32> to vector<1x4x2xf32>
    %78 = vector.shape_cast %77 : vector<1x4x2xf32> to vector<4x2xf32>
    %c2_29 = arith.constant 2 : index
    %c2_30 = arith.constant 2 : index
    %79 = memref.load %arg2[%c2_29, %c2_30] : memref<4x4xf32, #tpu.memory_space<smem>>
    %80 = vector.broadcast %79 : f32 to vector<4x2xf32>
    %81 = arith.mulf %78, %80 : vector<4x2xf32>
    %82 = arith.addf %76, %81 : vector<4x2xf32>
    %83 = vector.extract_strided_slice %0 {offsets = [3, 0, 0], sizes = [1, 4, 2], strides = [1, 1, 1]} : vector<4x4x2xf32> to vector<1x4x2xf32>
    %84 = vector.shape_cast %83 : vector<1x4x2xf32> to vector<4x2xf32>
    %c2_31 = arith.constant 2 : index
    %c3_32 = arith.constant 3 : index
    %85 = memref.load %arg2[%c2_31, %c3_32] : memref<4x4xf32, #tpu.memory_space<smem>>
    %86 = vector.broadcast %85 : f32 to vector<4x2xf32>
    %87 = arith.mulf %84, %86 : vector<4x2xf32>
    %88 = arith.addf %82, %87 : vector<4x2xf32>
    %cst_33 = arith.constant 0.000000e+00 : f32
    %89 = vector.broadcast %cst_33 : f32 to vector<4x2xf32>
    %90 = arith.maximumf %88, %89 : vector<4x2xf32>
    %c2_34 = arith.constant 2 : index
    %c0_35 = arith.constant 0 : index
    %c0_36 = arith.constant 0 : index
    %91 = vector.load %arg6[%c2_34, %c0_35, %c0_36] : memref<4x4x2xf32, #tpu.memory_space<vmem>>, vector<1x4x2xf32>
    %92 = vector.shape_cast %91 : vector<1x4x2xf32> to vector<4x2xf32>
    %93 = vector.shape_cast %90 : vector<4x2xf32> to vector<1x4x2xf32>
    tpu.vector_store %arg6[%c2_34, %c0_35, %c0_36], %93 {strides = array<i32>} : memref<4x4x2xf32, #tpu.memory_space<vmem>>, vector<1x4x2xf32>,
    %94 = vector.extract_strided_slice %0 {offsets = [0, 0, 0], sizes = [1, 4, 2], strides = [1, 1, 1]} : vector<4x4x2xf32> to vector<1x4x2xf32>
    %95 = vector.shape_cast %94 : vector<1x4x2xf32> to vector<4x2xf32>
    %c3_37 = arith.constant 3 : index
    %c0_38 = arith.constant 0 : index
    %96 = memref.load %arg2[%c3_37, %c0_38] : memref<4x4xf32, #tpu.memory_space<smem>>
    %97 = vector.broadcast %96 : f32 to vector<4x2xf32>
    %98 = arith.mulf %95, %97 : vector<4x2xf32>
    %c3_39 = arith.constant 3 : index
    %99 = memref.load %arg3[%c3_39] : memref<4xf32, #tpu.memory_space<smem>>
    %100 = vector.broadcast %99 : f32 to vector<4x2xf32>
    %101 = arith.addf %98, %100 : vector<4x2xf32>
    %102 = vector.extract_strided_slice %0 {offsets = [1, 0, 0], sizes = [1, 4, 2], strides = [1, 1, 1]} : vector<4x4x2xf32> to vector<1x4x2xf32>
    %103 = vector.shape_cast %102 : vector<1x4x2xf32> to vector<4x2xf32>
    %c3_40 = arith.constant 3 : index
    %c1_41 = arith.constant 1 : index
    %104 = memref.load %arg2[%c3_40, %c1_41] : memref<4x4xf32, #tpu.memory_space<smem>>
    %105 = vector.broadcast %104 : f32 to vector<4x2xf32>
    %106 = arith.mulf %103, %105 : vector<4x2xf32>
    %107 = arith.addf %101, %106 : vector<4x2xf32>
    %108 = vector.extract_strided_slice %0 {offsets = [2, 0, 0], sizes = [1, 4, 2], strides = [1, 1, 1]} : vector<4x4x2xf32> to vector<1x4x2xf32>
    %109 = vector.shape_cast %108 : vector<1x4x2xf32> to vector<4x2xf32>
    %c3_42 = arith.constant 3 : index
    %c2_43 = arith.constant 2 : index
    %110 = memref.load %arg2[%c3_42, %c2_43] : memref<4x4xf32, #tpu.memory_space<smem>>
    %111 = vector.broadcast %110 : f32 to vector<4x2xf32>
    %112 = arith.mulf %109, %111 : vector<4x2xf32>
    %113 = arith.addf %107, %112 : vector<4x2xf32>
    %114 = vector.extract_strided_slice %0 {offsets = [3, 0, 0], sizes = [1, 4, 2], strides = [1, 1, 1]} : vector<4x4x2xf32> to vector<1x4x2xf32>
    %115 = vector.shape_cast %114 : vector<1x4x2xf32> to vector<4x2xf32>
    %c3_44 = arith.constant 3 : index
    %c3_45 = arith.constant 3 : index
    %116 = memref.load %arg2[%c3_44, %c3_45] : memref<4x4xf32, #tpu.memory_space<smem>>
    %117 = vector.broadcast %116 : f32 to vector<4x2xf32>
    %118 = arith.mulf %115, %117 : vector<4x2xf32>
    %119 = arith.addf %113, %118 : vector<4x2xf32>
    %cst_46 = arith.constant 0.000000e+00 : f32
    %120 = vector.broadcast %cst_46 : f32 to vector<4x2xf32>
    %121 = arith.maximumf %119, %120 : vector<4x2xf32>
    %c3_47 = arith.constant 3 : index
    %c0_48 = arith.constant 0 : index
    %c0_49 = arith.constant 0 : index
    %122 = vector.load %arg6[%c3_47, %c0_48, %c0_49] : memref<4x4x2xf32, #tpu.memory_space<vmem>>, vector<1x4x2xf32>
    %123 = vector.shape_cast %122 : vector<1x4x2xf32> to vector<4x2xf32>
    %124 = vector.shape_cast %121 : vector<4x2xf32> to vector<1x4x2xf32>
    tpu.vector_store %arg6[%c3_47, %c0_48, %c0_49], %124 {strides = array<i32>} : memref<4x4x2xf32, #tpu.memory_space<vmem>>, vector<1x4x2xf32>,
    %c0_50 = arith.constant 0 : index
    %c0_51 = arith.constant 0 : index
    %125 = memref.load %arg4[%c0_50, %c0_51] : memref<4x4xf32, #tpu.memory_space<smem>>
    %126 = vector.broadcast %125 : f32 to vector<4x2xf32>
    %127 = arith.mulf %28, %126 : vector<4x2xf32>
    %c0_52 = arith.constant 0 : index
    %128 = memref.load %arg5[%c0_52] : memref<4xf32, #tpu.memory_space<smem>>
    %129 = vector.broadcast %128 : f32 to vector<4x2xf32>
    %130 = arith.addf %127, %129 : vector<4x2xf32>
    %c0_53 = arith.constant 0 : index
    %c1_54 = arith.constant 1 : index
    %131 = memref.load %arg4[%c0_53, %c1_54] : memref<4x4xf32, #tpu.memory_space<smem>>
    %132 = vector.broadcast %131 : f32 to vector<4x2xf32>
    %133 = arith.mulf %59, %132 : vector<4x2xf32>
    %134 = arith.addf %130, %133 : vector<4x2xf32>
    %c0_55 = arith.constant 0 : index
    %c2_56 = arith.constant 2 : index
    %135 = memref.load %arg4[%c0_55, %c2_56] : memref<4x4xf32, #tpu.memory_space<smem>>
    %136 = vector.broadcast %135 : f32 to vector<4x2xf32>
    %137 = arith.mulf %90, %136 : vector<4x2xf32>
    %138 = arith.addf %134, %137 : vector<4x2xf32>
    %c0_57 = arith.constant 0 : index
    %c3_58 = arith.constant 3 : index
    %139 = memref.load %arg4[%c0_57, %c3_58] : memref<4x4xf32, #tpu.memory_space<smem>>
    %140 = vector.broadcast %139 : f32 to vector<4x2xf32>
    %141 = arith.mulf %121, %140 : vector<4x2xf32>
    %142 = arith.addf %138, %141 : vector<4x2xf32>
    %c1_59 = arith.constant 1 : index
    %c0_60 = arith.constant 0 : index
    %143 = memref.load %arg4[%c1_59, %c0_60] : memref<4x4xf32, #tpu.memory_space<smem>>
    %144 = vector.broadcast %143 : f32 to vector<4x2xf32>
    %145 = arith.mulf %28, %144 : vector<4x2xf32>
    %c1_61 = arith.constant 1 : index
    %146 = memref.load %arg5[%c1_61] : memref<4xf32, #tpu.memory_space<smem>>
    %147 = vector.broadcast %146 : f32 to vector<4x2xf32>
    %148 = arith.addf %145, %147 : vector<4x2xf32>
    %c1_62 = arith.constant 1 : index
    %c1_63 = arith.constant 1 : index
    %149 = memref.load %arg4[%c1_62, %c1_63] : memref<4x4xf32, #tpu.memory_space<smem>>
    %150 = vector.broadcast %149 : f32 to vector<4x2xf32>
    %151 = arith.mulf %59, %150 : vector<4x2xf32>
    %152 = arith.addf %148, %151 : vector<4x2xf32>
    %c1_64 = arith.constant 1 : index
    %c2_65 = arith.constant 2 : index
    %153 = memref.load %arg4[%c1_64, %c2_65] : memref<4x4xf32, #tpu.memory_space<smem>>
    %154 = vector.broadcast %153 : f32 to vector<4x2xf32>
    %155 = arith.mulf %90, %154 : vector<4x2xf32>
    %156 = arith.addf %152, %155 : vector<4x2xf32>
    %c1_66 = arith.constant 1 : index
    %c3_67 = arith.constant 3 : index
    %157 = memref.load %arg4[%c1_66, %c3_67] : memref<4x4xf32, #tpu.memory_space<smem>>
    %158 = vector.broadcast %157 : f32 to vector<4x2xf32>
    %159 = arith.mulf %121, %158 : vector<4x2xf32>
    %160 = arith.addf %156, %159 : vector<4x2xf32>
    %c2_68 = arith.constant 2 : index
    %c0_69 = arith.constant 0 : index
    %161 = memref.load %arg4[%c2_68, %c0_69] : memref<4x4xf32, #tpu.memory_space<smem>>
    %162 = vector.broadcast %161 : f32 to vector<4x2xf32>
    %163 = arith.mulf %28, %162 : vector<4x2xf32>
    %c2_70 = arith.constant 2 : index
    %164 = memref.load %arg5[%c2_70] : memref<4xf32, #tpu.memory_space<smem>>
    %165 = vector.broadcast %164 : f32 to vector<4x2xf32>
    %166 = arith.addf %163, %165 : vector<4x2xf32>
    %c2_71 = arith.constant 2 : index
    %c1_72 = arith.constant 1 : index
    %167 = memref.load %arg4[%c2_71, %c1_72] : memref<4x4xf32, #tpu.memory_space<smem>>
    %168 = vector.broadcast %167 : f32 to vector<4x2xf32>
    %169 = arith.mulf %59, %168 : vector<4x2xf32>
    %170 = arith.addf %166, %169 : vector<4x2xf32>
    %c2_73 = arith.constant 2 : index
    %c2_74 = arith.constant 2 : index
    %171 = memref.load %arg4[%c2_73, %c2_74] : memref<4x4xf32, #tpu.memory_space<smem>>
    %172 = vector.broadcast %171 : f32 to vector<4x2xf32>
    %173 = arith.mulf %90, %172 : vector<4x2xf32>
    %174 = arith.addf %170, %173 : vector<4x2xf32>
    %c2_75 = arith.constant 2 : index
    %c3_76 = arith.constant 3 : index
    %175 = memref.load %arg4[%c2_75, %c3_76] : memref<4x4xf32, #tpu.memory_space<smem>>
    %176 = vector.broadcast %175 : f32 to vector<4x2xf32>
    %177 = arith.mulf %121, %176 : vector<4x2xf32>
    %178 = arith.addf %174, %177 : vector<4x2xf32>
    %c3_77 = arith.constant 3 : index
    %c0_78 = arith.constant 0 : index
    %179 = memref.load %arg4[%c3_77, %c0_78] : memref<4x4xf32, #tpu.memory_space<smem>>
    %180 = vector.broadcast %179 : f32 to vector<4x2xf32>
    %181 = arith.mulf %28, %180 : vector<4x2xf32>
    %c3_79 = arith.constant 3 : index
    %182 = memref.load %arg5[%c3_79] : memref<4xf32, #tpu.memory_space<smem>>
    %183 = vector.broadcast %182 : f32 to vector<4x2xf32>
    %184 = arith.addf %181, %183 : vector<4x2xf32>
    %c3_80 = arith.constant 3 : index
    %c1_81 = arith.constant 1 : index
    %185 = memref.load %arg4[%c3_80, %c1_81] : memref<4x4xf32, #tpu.memory_space<smem>>
    %186 = vector.broadcast %185 : f32 to vector<4x2xf32>
    %187 = arith.mulf %59, %186 : vector<4x2xf32>
    %188 = arith.addf %184, %187 : vector<4x2xf32>
    %c3_82 = arith.constant 3 : index
    %c2_83 = arith.constant 2 : index
    %189 = memref.load %arg4[%c3_82, %c2_83] : memref<4x4xf32, #tpu.memory_space<smem>>
    %190 = vector.broadcast %189 : f32 to vector<4x2xf32>
    %191 = arith.mulf %90, %190 : vector<4x2xf32>
    %192 = arith.addf %188, %191 : vector<4x2xf32>
    %c3_84 = arith.constant 3 : index
    %c3_85 = arith.constant 3 : index
    %193 = memref.load %arg4[%c3_84, %c3_85] : memref<4x4xf32, #tpu.memory_space<smem>>
    %194 = vector.broadcast %193 : f32 to vector<4x2xf32>
    %195 = arith.mulf %121, %194 : vector<4x2xf32>
    %196 = arith.addf %192, %195 : vector<4x2xf32>
    %197 = vector.shape_cast %142 : vector<4x2xf32> to vector<1x4x2xf32>
    %198 = vector.shape_cast %160 : vector<4x2xf32> to vector<1x4x2xf32>
    %199 = vector.shape_cast %178 : vector<4x2xf32> to vector<1x4x2xf32>
    %200 = vector.shape_cast %196 : vector<4x2xf32> to vector<1x4x2xf32>
    %201 = tpu.concatenate %197, %198, %199, %200 in 0 : vector<1x4x2xf32>, vector<1x4x2xf32>, vector<1x4x2xf32>, vector<1x4x2xf32> -> vector<4x4x2xf32>
    %cst_86 = arith.constant 0.000000e+00 : f32
    %202 = vector.broadcast %cst_86 : f32 to vector<1x2xf32>
    %203 = vector.extract_strided_slice %201 {offsets = [0, 0, 0], sizes = [1, 1, 2], strides = [1, 1, 1]} : vector<4x4x2xf32> to vector<1x1x2xf32>
    %204 = math.absf %203 : vector<1x1x2xf32>
    %205 = math.log %204 : vector<1x1x2xf32>
    %206 = vector.shape_cast %205 : vector<1x1x2xf32> to vector<1x2xf32>
    %207 = arith.addf %202, %206 : vector<1x2xf32>
    %cst_87 = arith.constant 1.000000e-30 : f32
    %208 = vector.broadcast %cst_87 : f32 to vector<1x1x2xf32>
    %209 = arith.maximumf %204, %208 : vector<1x1x2xf32>
    %cst_88 = arith.constant 0.000000e+00 : f32
    %210 = vector.broadcast %cst_88 : f32 to vector<1x1x2xf32>
    %211 = arith.cmpf olt, %203, %210 : vector<1x1x2xf32>
    %cst_89 = arith.constant 0.000000e+00 : f32
    %212 = vector.broadcast %cst_89 : f32 to vector<1x1x2xf32>
    %213 = arith.subf %212, %209 : vector<1x1x2xf32>
    %214 = arith.select %211, %213, %209 : vector<1x1x2xi1>, vector<1x1x2xf32>
    %215 = tpu.reciprocal %214 {approx = true} : vector<1x1x2xf32> -> vector<1x1x2xf32>
    %216 = vector.extract_strided_slice %201 {offsets = [1, 0, 0], sizes = [3, 1, 2], strides = [1, 1, 1]} : vector<4x4x2xf32> to vector<3x1x2xf32>
    %217 = vector.extract_strided_slice %201 {offsets = [0, 1, 0], sizes = [1, 3, 2], strides = [1, 1, 1]} : vector<4x4x2xf32> to vector<1x3x2xf32>
    %218 = vector.extract_strided_slice %201 {offsets = [1, 1, 0], sizes = [3, 3, 2], strides = [1, 1, 1]} : vector<4x4x2xf32> to vector<3x3x2xf32>
    %219 = vector.broadcast %215 : vector<1x1x2xf32> to vector<3x1x2xf32>
    %220 = arith.mulf %216, %219 : vector<3x1x2xf32>
    %221 = vector.broadcast %220 : vector<3x1x2xf32> to vector<3x3x2xf32>
    %222 = vector.broadcast %217 : vector<1x3x2xf32> to vector<3x3x2xf32>
    %223 = arith.mulf %221, %222 : vector<3x3x2xf32>
    %224 = arith.subf %218, %223 : vector<3x3x2xf32>
    %225 = vector.extract_strided_slice %224 {offsets = [0, 0, 0], sizes = [1, 1, 2], strides = [1, 1, 1]} : vector<3x3x2xf32> to vector<1x1x2xf32>
    %226 = math.absf %225 : vector<1x1x2xf32>
    %227 = math.log %226 : vector<1x1x2xf32>
    %228 = vector.shape_cast %227 : vector<1x1x2xf32> to vector<1x2xf32>
    %229 = arith.addf %207, %228 : vector<1x2xf32>
    %cst_90 = arith.constant 1.000000e-30 : f32
    %230 = vector.broadcast %cst_90 : f32 to vector<1x1x2xf32>
    %231 = arith.maximumf %226, %230 : vector<1x1x2xf32>
    %cst_91 = arith.constant 0.000000e+00 : f32
    %232 = vector.broadcast %cst_91 : f32 to vector<1x1x2xf32>
    %233 = arith.cmpf olt, %225, %232 : vector<1x1x2xf32>
    %cst_92 = arith.constant 0.000000e+00 : f32
    %234 = vector.broadcast %cst_92 : f32 to vector<1x1x2xf32>
    %235 = arith.subf %234, %231 : vector<1x1x2xf32>
    %236 = arith.select %233, %235, %231 : vector<1x1x2xi1>, vector<1x1x2xf32>
    %237 = tpu.reciprocal %236 {approx = true} : vector<1x1x2xf32> -> vector<1x1x2xf32>
    %238 = vector.extract_strided_slice %224 {offsets = [1, 0, 0], sizes = [2, 1, 2], strides = [1, 1, 1]} : vector<3x3x2xf32> to vector<2x1x2xf32>
    %239 = vector.extract_strided_slice %224 {offsets = [0, 1, 0], sizes = [1, 2, 2], strides = [1, 1, 1]} : vector<3x3x2xf32> to vector<1x2x2xf32>
    %240 = vector.extract_strided_slice %224 {offsets = [1, 1, 0], sizes = [2, 2, 2], strides = [1, 1, 1]} : vector<3x3x2xf32> to vector<2x2x2xf32>
    %241 = vector.broadcast %237 : vector<1x1x2xf32> to vector<2x1x2xf32>
    %242 = arith.mulf %238, %241 : vector<2x1x2xf32>
    %243 = vector.broadcast %242 : vector<2x1x2xf32> to vector<2x2x2xf32>
    %244 = vector.broadcast %239 : vector<1x2x2xf32> to vector<2x2x2xf32>
    %245 = arith.mulf %243, %244 : vector<2x2x2xf32>
    %246 = arith.subf %240, %245 : vector<2x2x2xf32>
    %247 = vector.extract_strided_slice %246 {offsets = [0, 0, 0], sizes = [1, 1, 2], strides = [1, 1, 1]} : vector<2x2x2xf32> to vector<1x1x2xf32>
    %248 = math.absf %247 : vector<1x1x2xf32>
    %249 = math.log %248 : vector<1x1x2xf32>
    %250 = vector.shape_cast %249 : vector<1x1x2xf32> to vector<1x2xf32>
    %251 = arith.addf %229, %250 : vector<1x2xf32>
    %cst_93 = arith.constant 1.000000e-30 : f32
    %252 = vector.broadcast %cst_93 : f32 to vector<1x1x2xf32>
    %253 = arith.maximumf %248, %252 : vector<1x1x2xf32>
    %cst_94 = arith.constant 0.000000e+00 : f32
    %254 = vector.broadcast %cst_94 : f32 to vector<1x1x2xf32>
    %255 = arith.cmpf olt, %247, %254 : vector<1x1x2xf32>
    %cst_95 = arith.constant 0.000000e+00 : f32
    %256 = vector.broadcast %cst_95 : f32 to vector<1x1x2xf32>
    %257 = arith.subf %256, %253 : vector<1x1x2xf32>
    %258 = arith.select %255, %257, %253 : vector<1x1x2xi1>, vector<1x1x2xf32>
    %259 = tpu.reciprocal %258 {approx = true} : vector<1x1x2xf32> -> vector<1x1x2xf32>
    %260 = vector.extract_strided_slice %246 {offsets = [1, 0, 0], sizes = [1, 1, 2], strides = [1, 1, 1]} : vector<2x2x2xf32> to vector<1x1x2xf32>
    %261 = vector.extract_strided_slice %246 {offsets = [0, 1, 0], sizes = [1, 1, 2], strides = [1, 1, 1]} : vector<2x2x2xf32> to vector<1x1x2xf32>
    %262 = vector.extract_strided_slice %246 {offsets = [1, 1, 0], sizes = [1, 1, 2], strides = [1, 1, 1]} : vector<2x2x2xf32> to vector<1x1x2xf32>
    %263 = arith.mulf %260, %259 : vector<1x1x2xf32>
    %264 = arith.mulf %263, %261 : vector<1x1x2xf32>
    %265 = arith.subf %262, %264 : vector<1x1x2xf32>
    %266 = math.absf %265 : vector<1x1x2xf32>
    %267 = math.log %266 : vector<1x1x2xf32>
    %268 = vector.shape_cast %267 : vector<1x1x2xf32> to vector<1x2xf32>
    %269 = arith.addf %251, %268 : vector<1x2xf32>
    %c0_96 = arith.constant 0 : index
    %c0_97 = arith.constant 0 : index
    %270 = vector.load %arg7[%c0_96, %c0_97] : memref<1x2xf32, #tpu.memory_space<vmem>>, vector<1x2xf32>
    tpu.vector_store %arg7[%c0_96, %c0_97], %269 {strides = array<i32>} : memref<1x2xf32, #tpu.memory_space<vmem>>, vector<1x2xf32>,
    return
  }
  func.func @transform_0(%arg0: i32) -> (i32, i32, i32) {
    %c0_i32 = arith.constant 0 : i32
    %c0_i32_0 = arith.constant 0 : i32
    %c0_i32_1 = arith.constant 0 : i32
    return %c0_i32, %c0_i32_0, %arg0 : i32, i32, i32
  }
  func.func @transform_1(%arg0: i32) -> (i32, i32) {
    %c0_i32 = arith.constant 0 : i32
    %c0_i32_0 = arith.constant 0 : i32
    %c0_i32_1 = arith.constant 0 : i32
    return %c0_i32, %c0_i32_0 : i32, i32
  }
  func.func @transform_2(%arg0: i32) -> i32 {
    %c0_i32 = arith.constant 0 : i32
    %c0_i32_0 = arith.constant 0 : i32
    return %c0_i32 : i32
  }
  func.func @transform_3(%arg0: i32) -> (i32, i32) {
    %c0_i32 = arith.constant 0 : i32
    %c0_i32_0 = arith.constant 0 : i32
    %c0_i32_1 = arith.constant 0 : i32
    return %c0_i32, %c0_i32_0 : i32, i32
  }
  func.func @transform_4(%arg0: i32) -> i32 {
    %c0_i32 = arith.constant 0 : i32
    %c0_i32_0 = arith.constant 0 : i32
    return %c0_i32 : i32
  }
  func.func @transform_5(%arg0: i32) -> (i32, i32, i32) {
    %c0_i32 = arith.constant 0 : i32
    %c0_i32_0 = arith.constant 0 : i32
    %c0_i32_1 = arith.constant 0 : i32
    return %c0_i32, %c0_i32_0, %arg0 : i32, i32, i32
  }
  func.func @transform_6(%arg0: i32) -> (i32, i32) {
    %c0_i32 = arith.constant 0 : i32
    %c0_i32_0 = arith.constant 0 : i32
    return %c0_i32, %arg0 : i32, i32
  }
}

</mosaic_0001>

<llo_original>
// kernel: tpu_custom_call.1
$region0: #{tpu_custom_call.1}
  #allocation0 [shape = 'u32[]', space=smem, size = 0x4, offset = 0x4, fixed_abs, tag = 'smem constant byte address 0x4 - core index']
  #allocation1 [shape = 'u32[72,128]{1,0:T(1,128)}', space=vmem, size = 0x9000, scoped, tag = 'internal scratch']
  %s0 = inlined_call_operand.vmem [shape: f32[4,4,2], index: 0, kind: input, shape index: {}]
  %s1 = inlined_call_operand.vmem [shape: f32[4,4], index: 1, kind: input, shape index: {}]
  %s2 = inlined_call_operand.vmem [shape: f32[4], index: 2, kind: input, shape index: {}]
  %s3 = inlined_call_operand.vmem [shape: f32[4,4], index: 3, kind: input, shape index: {}]
  %s4 = inlined_call_operand.vmem [shape: f32[4], index: 4, kind: input, shape index: {}]
  %s5 = inlined_call_operand.vmem [shape: f32[4,4,2], index: 5, kind: output, shape index: {0}]
  %s6 = inlined_call_operand.hbm [shape: f32[1,2], index: 6, kind: output, shape index: {1}]
  %7 = xla_tuple %s5, %s6
  %s8 = sld [smem:[#allocation0]]
  $region54: #{tpu_custom_call.1} parent=0
    _
  %s10 = ssub.s32 1, %s8
  %s11 = scalar_select 0, %s10, %s8
  $region1: #{tpu_custom_call.1} parent=0
    #allocation2 [shape = 'u8[2048]{0}', space=smem, size = 0x800, scoped, tag = 'input window, operand 1, single buffered']
    #allocation3 [shape = 's32[1]{0}', space=sflag, size = 0x4, scoped, tag = 'scoped memory for tpu_custom_call.1']
    #allocation4 [shape = 's32[1]{0}', space=sflag, size = 0x4, scoped, tag = 'scoped memory for tpu_custom_call.1']
    #allocation5 [shape = 'u8[512]{0}', space=smem, size = 0x200, scoped, tag = 'input window, operand 2, single buffered']
    #allocation6 [shape = 's32[1]{0}', space=sflag, size = 0x4, scoped, tag = 'scoped memory for tpu_custom_call.1']
    #allocation7 [shape = 'u8[2048]{0}', space=smem, size = 0x800, scoped, tag = 'input window, operand 3, single buffered']
    #allocation8 [shape = 'u8[512]{0}', space=smem, size = 0x200, scoped, tag = 'input window, operand 4, single buffered']
    #allocation9 [shape = 's32[1]{0}', space=sflag, size = 0x4, scoped, tag = 'scoped memory for tpu_custom_call.1']
    #allocation10 [shape = 'u8[512]{0}', space=vmem, size = 0x400, scoped, tag = 'output window, operand 1, single buffered']
    %12 = vsyncpa [#allocation4], 0
    %13 = vsyncpa [#allocation6], 0
    %14 = vsyncpa [#allocation9], 0
    %15 = vsyncpa [#allocation3], 0
    // Predicated region
    $region2: #{tpu_custom_call.1} parent=1 // pred_check
      _
    $region3: #{tpu_custom_call.1} parent=1 // pred_check_branch
      %17 = sbr.rel (0) target = $region5
    $region4: #{tpu_custom_call.1} parent=1 // pred_region
      _
    $region5: #{tpu_custom_call.1} parent=1 // pred_fallthru
      _
    // Predicated region
    $region6: #{tpu_custom_call.1} parent=1 // pred_check
      _
    $region7: #{tpu_custom_call.1} parent=1 // pred_check_branch
      %19 = sbr.rel (0) target = $region9
    $region8: #{tpu_custom_call.1} parent=1 // pred_region
      %21 = vsyncadd [#allocation4], 0
      %s23 = sshll.u32 %s1, 4
      %s24 = int_to_ptr.vmem [resolvable:$true] %s23
      %26 = dma.vmem_to_smem %s24, 64, [#allocation2], [#allocation4]
    $region9: #{tpu_custom_call.1} parent=1 // pred_fallthru
      _
    // Predicated region
    $region10: #{tpu_custom_call.1} parent=1 // pred_check
      _
    $region11: #{tpu_custom_call.1} parent=1 // pred_check_branch
      %28 = sbr.rel (0) target = $region13
    $region12: #{tpu_custom_call.1} parent=1 // pred_region
      %30 = vsyncadd [#allocation6], 0
      %s32 = sshll.u32 %s2, 4
      %s33 = int_to_ptr.vmem [resolvable:$true] %s32
      %35 = dma.vmem_to_smem %s33, 16, [#allocation5], [#allocation6]
    $region13: #{tpu_custom_call.1} parent=1 // pred_fallthru
      _
    // Predicated region
    $region14: #{tpu_custom_call.1} parent=1 // pred_check
      _
    $region15: #{tpu_custom_call.1} parent=1 // pred_check_branch
      %37 = sbr.rel (0) target = $region17
    $region16: #{tpu_custom_call.1} parent=1 // pred_region
      %39 = vsyncadd [#allocation6], 0
      %s41 = sshll.u32 %s3, 4
      %s42 = int_to_ptr.vmem [resolvable:$true] %s41
      %44 = dma.vmem_to_smem %s42, 64, [#allocation7], [#allocation6]
    $region17: #{tpu_custom_call.1} parent=1 // pred_fallthru
      _
    // Predicated region
    $region18: #{tpu_custom_call.1} parent=1 // pred_check
      _
    $region19: #{tpu_custom_call.1} parent=1 // pred_check_branch
      %46 = sbr.rel (0) target = $region21
    $region20: #{tpu_custom_call.1} parent=1 // pred_region
      %48 = vsyncadd [#allocation9], 0
      %s50 = sshll.u32 %s4, 4
      %s51 = int_to_ptr.vmem [resolvable:$true] %s50
      %53 = dma.vmem_to_smem %s51, 16, [#allocation8], [#allocation9]
    $region21: #{tpu_custom_call.1} parent=1 // pred_fallthru
      _
    // Predicated region
    $region22: #{tpu_custom_call.1} parent=1 // pred_check
      _
    $region23: #{tpu_custom_call.1} parent=1 // pred_check_branch
      %55 = sbr.rel (0) target = $region25
    $region24: #{tpu_custom_call.1} parent=1 // pred_region
      %57 = dma.done [#allocation4], 64
    $region25: #{tpu_custom_call.1} parent=1 // pred_fallthru
      _
    // Predicated region
    $region26: #{tpu_custom_call.1} parent=1 // pred_check
      _
    $region27: #{tpu_custom_call.1} parent=1 // pred_check_branch
      %59 = sbr.rel (0) target = $region29
    $region28: #{tpu_custom_call.1} parent=1 // pred_region
      %61 = dma.done [#allocation6], 16
    $region29: #{tpu_custom_call.1} parent=1 // pred_fallthru
      _
    // Predicated region
    $region30: #{tpu_custom_call.1} parent=1 // pred_check
      _
    $region31: #{tpu_custom_call.1} parent=1 // pred_check_branch
      %63 = sbr.rel (0) target = $region33
    $region32: #{tpu_custom_call.1} parent=1 // pred_region
      %65 = dma.done [#allocation6], 64
    $region33: #{tpu_custom_call.1} parent=1 // pred_fallthru
      _
    // Predicated region
    $region34: #{tpu_custom_call.1} parent=1 // pred_check
      _
    $region35: #{tpu_custom_call.1} parent=1 // pred_check_branch
      %67 = sbr.rel (0) target = $region37
    $region36: #{tpu_custom_call.1} parent=1 // pred_region
      %69 = dma.done [#allocation9], 16
    $region37: #{tpu_custom_call.1} parent=1 // pred_fallthru
      _
    %70 = sfence
    %v71 = vld [vmem:[%s0] sm:$0xf]
    %v72 = vld [vmem:[%s0 + $0x4] sm:$0xf]
    %v73 = vld [vmem:[%s0 + $0x8] sm:$0xf]
    %v74 = vld [vmem:[%s0 + $0xc] sm:$0xf]
    %s75 = sld [smem:[#allocation2]]
    %v76 = vstv %s75
    %v77 = vmul.f32 %v71, %v76
    %s78 = sld [smem:[#allocation5]]
    %v79 = vstv %s78
    %v80 = vadd.f32 %v77, %v79
    %s81 = sld [smem:[#allocation2 + $0x1]]
    %v82 = vstv %s81
    %v83 = vmul.f32 %v72, %v82
    %v84 = vadd.f32 %v80, %v83
    %s85 = sld [smem:[#allocation2 + $0x2]]
    %v86 = vstv %s85
    %v87 = vmul.f32 %v73, %v86
    %v88 = vadd.f32 %v84, %v87
    %s89 = sld [smem:[#allocation2 + $0x3]]
    %v90 = vstv %s89
    %v91 = vmul.f32 %v74, %v90
    %v92 = vadd.f32 %v88, %v91
    %v93 = vmax.f32 %v92, 0.0
    %vm94 = vcmask 11264
    %95 = vst.msk [vmem:[%s5] sm:$0xf] %vm94, %v93
    %s96 = sld [smem:[#allocation2 + $0x80]]
    %v97 = vstv %s96
    %v98 = vmul.f32 %v71, %v97
    %s99 = sld [smem:[#allocation5 + $0x1]]
    %v100 = vstv %s99
    %v101 = vadd.f32 %v98, %v100
    %s102 = sld [smem:[#allocation2 + $0x81]]
    %v103 = vstv %s102
    %v104 = vmul.f32 %v72, %v103
    %v105 = vadd.f32 %v101, %v104
    %s106 = sld [smem:[#allocation2 + $0x82]]
    %v107 = vstv %s106
    %v108 = vmul.f32 %v73, %v107
    %v109 = vadd.f32 %v105, %v108
    %s110 = sld [smem:[#allocation2 + $0x83]]
    %v111 = vstv %s110
    %v112 = vmul.f32 %v74, %v111
    %v113 = vadd.f32 %v109, %v112
    %v114 = vmax.f32 %v113, 0.0
    %s115 = scalar_lea.vmem %s5, 4
    %116 = vst.msk [vmem:[%s115] sm:$0xf] %vm94, %v114
    %s117 = sld [smem:[#allocation2 + $0x100]]
    %v118 = vstv %s117
    %v119 = vmul.f32 %v71, %v118
    %s120 = sld [smem:[#allocation5 + $0x2]]
    %v121 = vstv %s120
    %v122 = vadd.f32 %v119, %v121
    %s123 = sld [smem:[#allocation2 + $0x101]]
    %v124 = vstv %s123
    %v125 = vmul.f32 %v72, %v124
    %v126 = vadd.f32 %v122, %v125
    %s127 = sld [smem:[#allocation2 + $0x102]]
    %v128 = vstv %s127
    %v129 = vmul.f32 %v73, %v128
    %v130 = vadd.f32 %v126, %v129
    %s131 = sld [smem:[#allocation2 + $0x103]]
    %v132 = vstv %s131
    %v133 = vmul.f32 %v74, %v132
    %v134 = vadd.f32 %v130, %v133
    %v135 = vmax.f32 %v134, 0.0
    %s136 = scalar_lea.vmem %s5, 8
    %137 = vst.msk [vmem:[%s136] sm:$0xf] %vm94, %v135
    %s138 = sld [smem:[#allocation2 + $0x180]]
    %v139 = vstv %s138
    %v140 = vmul.f32 %v71, %v139
    %s141 = sld [smem:[#allocation5 + $0x3]]
    %v142 = vstv %s141
    %v143 = vadd.f32 %v140, %v142
    %s144 = sld [smem:[#allocation2 + $0x181]]
    %v145 = vstv %s144
    %v146 = vmul.f32 %v72, %v145
    %v147 = vadd.f32 %v143, %v146
    %s148 = sld [smem:[#allocation2 + $0x182]]
    %v149 = vstv %s148
    %v150 = vmul.f32 %v73, %v149
    %v151 = vadd.f32 %v147, %v150
    %s152 = sld [smem:[#allocation2 + $0x183]]
    %v153 = vstv %s152
    %v154 = vmul.f32 %v74, %v153
    %v155 = vadd.f32 %v151, %v154
    %v156 = vmax.f32 %v155, 0.0
    %s157 = scalar_lea.vmem %s5, 12
    %158 = vst.msk [vmem:[%s157] sm:$0xf] %vm94, %v156
    %s159 = sld [smem:[#allocation7]]
    %v160 = vstv %s159
    %v161 = vmul.f32 %v93, %v160
    %s162 = sld [smem:[#allocation8]]
    %v163 = vstv %s162
    %v164 = vadd.f32 %v161, %v163
    %s165 = sld [smem:[#allocation7 + $0x1]]
    %v166 = vstv %s165
    %v167 = vmul.f32 %v114, %v166
    %v168 = vadd.f32 %v164, %v167
    %s169 = sld [smem:[#allocation7 + $0x2]]
    %v170 = vstv %s169
    %v171 = vmul.f32 %v135, %v170
    %v172 = vadd.f32 %v168, %v171
    %s173 = sld [smem:[#allocation7 + $0x3]]
    %v174 = vstv %s173
    %v175 = vmul.f32 %v156, %v174
    %v176 = vadd.f32 %v172, %v175
    %s177 = sld [smem:[#allocation7 + $0x80]]
    %v178 = vstv %s177
    %v179 = vmul.f32 %v93, %v178
    %s180 = sld [smem:[#allocation8 + $0x1]]
    %v181 = vstv %s180
    %v182 = vadd.f32 %v179, %v181
    %s183 = sld [smem:[#allocation7 + $0x81]]
    %v184 = vstv %s183
    %v185 = vmul.f32 %v114, %v184
    %v186 = vadd.f32 %v182, %v185
    %s187 = sld [smem:[#allocation7 + $0x82]]
    %v188 = vstv %s187
    %v189 = vmul.f32 %v135, %v188
    %v190 = vadd.f32 %v186, %v189
    %s191 = sld [smem:[#allocation7 + $0x83]]
    %v192 = vstv %s191
    %v193 = vmul.f32 %v156, %v192
    %v194 = vadd.f32 %v190, %v193
    %s195 = sld [smem:[#allocation7 + $0x100]]
    %v196 = vstv %s195
    %v197 = vmul.f32 %v93, %v196
    %s198 = sld [smem:[#allocation8 + $0x2]]
    %v199 = vstv %s198
    %v200 = vadd.f32 %v197, %v199
    %s201 = sld [smem:[#allocation7 + $0x101]]
    %v202 = vstv %s201
    %v203 = vmul.f32 %v114, %v202
    %v204 = vadd.f32 %v200, %v203
    %s205 = sld [smem:[#allocation7 + $0x102]]
    %v206 = vstv %s205
    %v207 = vmul.f32 %v135, %v206
    %v208 = vadd.f32 %v204, %v207
    %s209 = sld [smem:[#allocation7 + $0x103]]
    %v210 = vstv %s209
    %v211 = vmul.f32 %v156, %v210
    %v212 = vadd.f32 %v208, %v211
    %s213 = sld [smem:[#allocation7 + $0x180]]
    %v214 = vstv %s213
    %v215 = vmul.f32 %v93, %v214
    %s216 = sld [smem:[#allocation8 + $0x3]]
    %v217 = vstv %s216
    %v218 = vadd.f32 %v215, %v217
    %s219 = sld [smem:[#allocation7 + $0x181]]
    %v220 = vstv %s219
    %v221 = vmul.f32 %v114, %v220
    %v222 = vadd.f32 %v218, %v221
    %s223 = sld [smem:[#allocation7 + $0x182]]
    %v224 = vstv %s223
    %v225 = vmul.f32 %v135, %v224
    %v226 = vadd.f32 %v222, %v225
    %s227 = sld [smem:[#allocation7 + $0x183]]
    %v228 = vstv %s227
    %v229 = vmul.f32 %v156, %v228
    %v230 = vadd.f32 %v226, %v229
    %v231 = vand.u32 2147483647, %v176
    %v232 = vlog2.pop %v231
    %v233 = vmul.f32 %v232, 0.6931472
    %v234 = vadd.f32 %v233, 0.0
    %v235 = vmax.f32 %v231, 1e-30
    %vm236 = vcmp.lt.f32.partialorder %v176, 0.0
    %v237 = vsub.f32 0.0, %v235
    %v238 = vsel %vm236, %v237, %v235
    %v239 = vrcp.pop %v238
    %v240 = vmul.f32 %v194, %v239
    %v241 = vmul.f32 %v212, %v239
    %v242 = vmul.f32 %v230, %v239
    %v243 = vperm.slane %v240, 0
    %v244 = vperm.slane %v241, 0
    %v245 = vperm.slane %v242, 0
    %v246 = vmul.f32 %v243, %v176
    %v247 = vmul.f32 %v244, %v176
    %v248 = vmul.f32 %v245, %v176
    %v249 = vsub.f32 %v194, %v246
    %v250 = vsub.f32 %v212, %v247
    %v251 = vsub.f32 %v230, %v248
    %v252 = vand.u32 2147483647, %v249
    %v253 = vlog2.pop %v252
    %v254 = vmul.f32 %v253, 0.6931472
    %v256 = vrot.slane %v254, 1
    %v258 = vadd.f32 %v234, %v256
    %v259 = vmax.f32 %v252, 1e-30
    %vm260 = vcmp.lt.f32.partialorder %v249, 0.0
    %v261 = vsub.f32 0.0, %v259
    %v262 = vsel %vm260, %v261, %v259
    %v263 = vrcp.pop %v262
    %v264 = vmul.f32 %v250, %v263
    %v265 = vmul.f32 %v251, %v263
    %v266 = vperm.slane %v264, 1
    %v267 = vperm.slane %v265, 1
    %v268 = vmul.f32 %v266, %v249
    %v269 = vmul.f32 %v267, %v249
    %v270 = vsub.f32 %v250, %v268
    %v271 = vsub.f32 %v251, %v269
    %v272 = vand.u32 2147483647, %v270
    %v273 = vlog2.pop %v272
    %v274 = vmul.f32 %v273, 0.6931472
    %v276 = vrot.slane %v274, 2
    %v278 = vadd.f32 %v258, %v276
    %v279 = vmax.f32 %v272, 1e-30
    %vm280 = vcmp.lt.f32.partialorder %v270, 0.0
    %v281 = vsub.f32 0.0, %v279
    %v282 = vsel %vm280, %v281, %v279
    %v283 = vrcp.pop %v282
    %v284 = vmul.f32 %v271, %v283
    %v286 = vrot.slane %v270, 1
    %v288 = vmul.f32 %v284, %v286
    %v290 = vrot.slane %v288, 7
    %v292 = vsub.f32 %v271, %v290
    %v293 = vand.u32 2147483647, %v292
    %v294 = vlog2.pop %v293
    %v295 = vmul.f32 %v294, 0.6931472
    %v297 = vrot.slane %v295, 3
    %v299 = vadd.f32 %v278, %v297
    %vm300 = vcmask 8192
    %301 = vst.msk [vmem:[#allocation10] sm:$0x1] %vm300, %v299
    // Predicated region
    $region38: #{tpu_custom_call.1} parent=1 // pred_check
      _
    $region39: #{tpu_custom_call.1} parent=1 // pred_check_branch
      %303 = sbr.rel (0) target = $region41
    $region40: #{tpu_custom_call.1} parent=1 // pred_region
      _
    $region41: #{tpu_custom_call.1} parent=1 // pred_fallthru
      _
    // Predicated region
    $region42: #{tpu_custom_call.1} parent=1 // pred_check
      _
    $region43: #{tpu_custom_call.1} parent=1 // pred_check_branch
      %305 = sbr.rel (0) target = $region45
    $region44: #{tpu_custom_call.1} parent=1 // pred_region
      %307 = vsyncadd [#allocation3], 0
      %s309 = sshll.u32 [#allocation10], 4
      %s310 = int_to_ptr.vmem [resolvable:$true] %s309
      %s311 = sshll.u32 %s6, 4
      %s312 = int_to_ptr.hbm [resolvable:$true] %s311
      %314 = dma.vmem_to_hbm [thread:$0]  %s310, 16, %s312, [#allocation3]
    $region45: #{tpu_custom_call.1} parent=1 // pred_fallthru
      _
    // Predicated region
    $region46: #{tpu_custom_call.1} parent=1 // pred_check
      _
    $region47: #{tpu_custom_call.1} parent=1 // pred_check_branch
      %316 = sbr.rel (0) target = $region49
    $region48: #{tpu_custom_call.1} parent=1 // pred_region
      _
    $region49: #{tpu_custom_call.1} parent=1 // pred_fallthru
      _
    // Predicated region
    $region50: #{tpu_custom_call.1} parent=1 // pred_check
      _
    $region51: #{tpu_custom_call.1} parent=1 // pred_check_branch
      %318 = sbr.rel (0) target = $region53
    $region52: #{tpu_custom_call.1} parent=1 // pred_region
      %320 = dma.done [#allocation3], 16
    $region53: #{tpu_custom_call.1} parent=1 // pred_fallthru
      _
    %321 = vsyncpa [#allocation3], 1
    %322 = vsyncpa [#allocation4], 1
    %323 = vsyncpa [#allocation6], 1
    %324 = vsyncpa [#allocation9], 1

</llo_original>
